<compile_context>
chip_gen: v6e
topology: v6e:2x2x1
jax: 0.10.0
libtpu: 0.0.40
codegen_flags: <defaults>
</compile_context>

<pallas_src>
import jax
import jax.numpy as jnp
from jax import lax
from jax.experimental import pallas as pl
from jax.experimental.pallas import tpu as pltpu

OUT_DIM = 768
_NEG_BIG = -1e30  # "invalid position" filler; ReLU clamps it to 0 before the max


def _round_up(x, m):
    return (x + m - 1) // m * m


def _charcnn_kernel(sid_ref, w2_ref, bm_ref, hww_ref, hwb_ref, o_ref):
    """one-hot conv matmul -> +(bias|mask) -> ReLU -> max over time -> Linear."""
    TB, Lp, n_tap = sid_ref.shape
    Wc, nKp = w2_ref.shape
    rows = TB * Lp

    sid = sid_ref[...]                                    # int32 [TB, Lp, n_tap]
    # Lane iota over the folded (tap, char-id) contraction axis.  Each tap's
    # pre-shifted, pre-offset id lights exactly one lane in its own band.
    vlane = lax.broadcasted_iota(jnp.int32, (TB, Lp, Wc), 2)
    hot = vlane == sid[:, :, 0:1]
    for dk in range(1, n_tap):
        hot = jnp.logical_or(hot, vlane == sid[:, :, dk:dk + 1])
    # (bool -> f32 -> matmul dtype; the reshape only merges leading dims, so
    # the lane layout is untouched and no relayout copy is needed.)
    lhs = hot.astype(jnp.float32).astype(w2_ref.dtype).reshape(rows, Wc)

    # One lane-dense MXU matmul covers every tap of every conv branch.
    acc = jnp.dot(lhs, w2_ref[...], preferred_element_type=jnp.float32)

    # bm holds the conv bias where (time, branch) is valid and -1e30 where it
    # is not (incl. padded time rows / padded lanes); ReLU zeroes those, which
    # is value-preserving under the max because valid ReLU outputs are >= 0.
    acc = jnp.maximum(acc.reshape(TB, Lp, nKp) + bm_ref[...], 0.0)
    pooled = jnp.max(acc, axis=1)                         # [TB, nKp] f32

    out = jnp.dot(pooled.astype(hww_ref.dtype), hww_ref[...],
                  preferred_element_type=jnp.float32)
    o_ref[...] = (out + hwb_ref[...]).astype(o_ref.dtype)


def _pick_batch_tile(B, block_b):
    # Guarantee >= 2 grid steps whenever the batch allows it so the "parallel"
    # batch axis can shard across both v7x TensorCores.  The tile must be a
    # multiple of 8 (f32 sublane) unless it covers the whole batch.
    tb = min(block_b, _round_up(max((B + 1) // 2, 1), 8))
    if tb >= B:
        return B
    return tb


def _pack_params(params, kernel_sizes, num_kernels, L, Lp, matmul_dtype):
    """Fold embedding into conv weights; merge bias + time mask; pad lane-dense."""
    max_ks = max(kernel_sizes)
    emb = params["emb"].astype(jnp.float32)               # [V, E]
    V = emb.shape[0]
    K = num_kernels
    nK = len(kernel_sizes) * K
    nKp = _round_up(nK, 128)
    Wc = _round_up(max_ks * V, 8)

    # Row dk*V + c of w2 is emb[c] @ conv_w_i[dk] for every branch i with
    # ks_i > dk; taps beyond a branch's kernel size (and padding rows/lanes)
    # stay zero, which keeps the wrapped/shifted reads harmless.
    w2 = jnp.zeros((Wc, nKp), jnp.float32)
    bm = jnp.full((Lp, nKp), _NEG_BIG, jnp.float32)
    for i, ks in enumerate(kernel_sizes):
        cw = params[f"conv_w_{i}"].astype(jnp.float32)    # [ks, E, K]
        cb = params[f"conv_b_{i}"].astype(jnp.float32).reshape(1, K)
        for dk in range(ks):
            w2 = w2.at[dk * V:(dk + 1) * V, i * K:(i + 1) * K].set(emb @ cw[dk])
        valid = L - ks + 1                                # conv output length
        bm = bm.at[:valid, i * K:(i + 1) * K].set(
            jnp.broadcast_to(cb, (valid, K)))

    # Padded rows of the highway weight are zero so padded lanes never reach
    # the 768-wide output (pooled padded lanes are already 0 as well).
    hww = jnp.zeros((nKp, OUT_DIM), jnp.float32)
    hww = hww.at[:nK, :].set(params["hw_w"].astype(jnp.float32))
    hwb = params["hw_b"].astype(jnp.float32).reshape(1, OUT_DIM)
    return (w2.astype(matmul_dtype), bm, hww.astype(matmul_dtype), hwb,
            V, Wc, nKp, max_ks)


def charcnn_forward(char_ids, params, kernel_sizes, num_kernels, *,
                    block_b=256, matmul_dtype=jnp.bfloat16,
                    out_dtype=jnp.float32):
    """char_ids: int32 [B, L] -> [B, 768] (out_dtype)."""
    B, L = char_ids.shape
    max_ks = max(kernel_sizes)
    if L < max_ks:
        raise ValueError(
            f"seq_length={L} is shorter than the largest kernel size {max_ks}; "
            "the PyTorch module would produce an empty conv output.")

    # Pad the time axis to a sublane multiple so in-kernel reshapes that merge
    # (batch, time) are layout-preserving; padded positions are masked by bm.
    Lp = _round_up(L, 8)
    ids = char_ids.astype(jnp.int32)
    if Lp != L:
        ids = jnp.pad(ids, ((0, 0), (0, Lp - L)))

    w2, bm, hww, hwb, V, Wc, nKp, max_ks = _pack_params(
        params, kernel_sizes, num_kernels, L, Lp, matmul_dtype)

    # Per-tap pre-shifted ids, already offset into the folded weight's row
    # space (dk*V + id).  Wrapped / padded reads only land in time positions
    # that bm marks invalid, so no cross-sample or padding leakage is possible.
    sid = jnp.stack([jnp.roll(ids, -dk, axis=1) + dk * V
                     for dk in range(max_ks)], axis=-1)    # int32 [B, Lp, max_ks]

    TB = _pick_batch_tile(B, block_b)
    grid = (pl.cdiv(B, TB),)

    flops = 2 * B * Lp * Wc * nKp + 2 * B * nKp * OUT_DIM
    bytes_accessed = (sid.size * 4 + B * OUT_DIM * jnp.dtype(out_dtype).itemsize
                      + w2.size * w2.dtype.itemsize
                      + hww.size * hww.dtype.itemsize
                      + (bm.size + hwb.size) * 4)

    return pl.pallas_call(
        _charcnn_kernel,
        out_shape=jax.ShapeDtypeStruct((B, OUT_DIM), out_dtype),
        grid=grid,
        in_specs=[
            pl.BlockSpec((TB, Lp, max_ks), lambda b: (b, 0, 0)),   # streamed ids
            pl.BlockSpec((Wc, nKp), lambda b: (0, 0)),             # resident
            pl.BlockSpec((Lp, nKp), lambda b: (0, 0)),             # resident
            pl.BlockSpec((nKp, OUT_DIM), lambda b: (0, 0)),        # resident
            pl.BlockSpec((1, OUT_DIM), lambda b: (0, 0)),          # resident
        ],
        out_specs=pl.BlockSpec((TB, OUT_DIM), lambda b: (b, 0)),
        compiler_params=pltpu.CompilerParams(
            dimension_semantics=("parallel",)),
        cost_estimate=pl.CostEstimate(flops=int(flops), transcendentals=0,
                                      bytes_accessed=int(bytes_accessed)),
    )(sid, w2, bm, hww, hwb)


def _reference_forward(char_ids, params, kernel_sizes, num_kernels):
    """Pure-JAX f32 reference reproducing the PyTorch forward exactly."""
    x = jnp.take(params["emb"], char_ids, axis=0)          # [B, L, E] f32
    B, L, _ = x.shape
    pooled = []
    for i, ks in enumerate(kernel_sizes):
        w = params[f"conv_w_{i}"]                          # [ks, E, K]
        b = params[f"conv_b_{i}"].reshape(-1)              # [K]
        L_out = L - ks + 1
        acc = jnp.zeros((B, L_out, num_kernels), jnp.float32)
        for dk in range(ks):
            acc = acc + jnp.einsum("ble,ek->blk", x[:, dk:dk + L_out, :], w[dk])
        acc = jax.nn.relu(acc + b[None, None, :])
        pooled.append(jnp.max(acc, axis=1))
    feat = jnp.concatenate(pooled, axis=1)                 # [B, n*K]
    return feat @ params["hw_w"] + params["hw_b"].reshape(1, -1)


def init_params(key, char_vocab_size, char_emb_dim, kernel_sizes, num_kernels):
    keys = jax.random.split(key, 2 + 2 * len(kernel_sizes) + 2)
    params = {}
    params["emb"] = 0.1 * jax.random.normal(
        keys[0], (char_vocab_size, char_emb_dim), jnp.float32)
    for i, ks in enumerate(kernel_sizes):
        params[f"conv_w_{i}"] = 0.1 * jax.random.normal(
            keys[1 + 2 * i], (ks, char_emb_dim, num_kernels), jnp.float32)
        params[f"conv_b_{i}"] = 0.1 * jax.random.normal(
            keys[2 + 2 * i], (1, num_kernels), jnp.float32)
    feat_dim = len(kernel_sizes) * num_kernels
    params["hw_w"] = 0.1 * jax.random.normal(
        keys[-2], (feat_dim, OUT_DIM), jnp.float32)
    params["hw_b"] = 0.1 * jax.random.normal(keys[-1], (1, OUT_DIM),
                                             jnp.float32)
    return params


def _check(char_ids, params, kernel_sizes, num_kernels, atol=5e-3, rtol=2e-2):
    out = charcnn_forward(char_ids, params, kernel_sizes, num_kernels)
    out = jax.block_until_ready(out)
    ref = _reference_forward(char_ids, params, kernel_sizes, num_kernels)
    assert out.shape == (char_ids.shape[0], OUT_DIM), out.shape
    assert bool(jnp.all(jnp.isfinite(out))), "non-finite values in kernel output"
    err = float(jnp.max(jnp.abs(out - ref)))
    assert jnp.allclose(out, ref, atol=atol, rtol=rtol), (
        "mismatch vs reference, max abs err = %f" % err)
    return out


if __name__ == "__main__":
    # Small shapes consistent with the module's forward.
    char_vocab_size = 32
    char_emb_dim = 16
    kernel_sizes = [2, 3, 4]
    num_kernels = 8
    batch, seq_len = 2, 16

    key = jax.random.PRNGKey(0)
    k_ids, k_ids2, k_params = jax.random.split(key, 3)
    params = init_params(k_params, char_vocab_size, char_emb_dim,
                         kernel_sizes, num_kernels)

    # Single-block case (batch=2).
    char_ids = jax.random.randint(k_ids, (batch, seq_len), 0, char_vocab_size,
                                  dtype=jnp.int32)
    _check(char_ids, params, kernel_sizes, num_kernels)

    # Multi-block case with a partial last block (exercises grid + padding).
    char_ids2 = jax.random.randint(k_ids2, (20, seq_len), 0, char_vocab_size,
                                   dtype=jnp.int32)
    _check(char_ids2, params, kernel_sizes, num_kernels)

    print("KERNEL_OK")
</pallas_src>

<mosaic_0001>
module attributes {stable_mosaic.version = 11 : i64} {
  func.func @_charcnn_kernel(%arg0: i32, %arg1: memref<2x16x4xi32, #tpu.memory_space<vmem>>, %arg2: memref<128x128xbf16, #tpu.memory_space<vmem>>, %arg3: memref<16x128xf32, #tpu.memory_space<vmem>>, %arg4: memref<128x768xbf16, #tpu.memory_space<vmem>>, %arg5: memref<1x768xf32, #tpu.memory_space<vmem>>, %arg6: memref<2x768xf32, #tpu.memory_space<vmem>>) attributes {dimension_semantics = [#tpu.dimension_semantics<parallel>], iteration_bounds = array<i64: 1>, scalar_prefetch = 0 : i64, scratch_operands = 0 : i64, tpu.core_type = #tpu.core_type<tc>, window_params = [{transform_indices = @transform_0, window_bounds = array<i64: 2, 16, 4>}, {pipeline_mode = #tpu.pipeline_mode<synchronous>, transform_indices = @transform_1, window_bounds = array<i64: 128, 128>}, {pipeline_mode = #tpu.pipeline_mode<synchronous>, transform_indices = @transform_2, window_bounds = array<i64: 16, 128>}, {pipeline_mode = #tpu.pipeline_mode<synchronous>, transform_indices = @transform_3, window_bounds = array<i64: 128, 768>}, {pipeline_mode = #tpu.pipeline_mode<synchronous>, transform_indices = @transform_4, window_bounds = array<i64: 1, 768>}, {transform_indices = @transform_5, window_bounds = array<i64: 2, 768>}]} {
    %c0 = arith.constant 0 : index
    %c0_0 = arith.constant 0 : index
    %c0_1 = arith.constant 0 : index
    %0 = vector.load %arg1[%c0, %c0_0, %c0_1] : memref<2x16x4xi32, #tpu.memory_space<vmem>>, vector<2x16x4xi32>
    %1 = tpu.iota {dimensions = array<i32: 2>} : vector<2x16x128xi32>
    %2 = vector.extract_strided_slice %0 {offsets = [0, 0, 0], sizes = [2, 16, 1], strides = [1, 1, 1]} : vector<2x16x4xi32> to vector<2x16x1xi32>
    %3 = vector.broadcast %2 : vector<2x16x1xi32> to vector<2x16x128xi32>
    %4 = arith.cmpi eq, %1, %3 : vector<2x16x128xi32>
    %5 = vector.extract_strided_slice %0 {offsets = [0, 0, 1], sizes = [2, 16, 1], strides = [1, 1, 1]} : vector<2x16x4xi32> to vector<2x16x1xi32>
    %6 = vector.broadcast %5 : vector<2x16x1xi32> to vector<2x16x128xi32>
    %7 = arith.cmpi eq, %1, %6 : vector<2x16x128xi32>
    %8 = arith.ori %4, %7 : vector<2x16x128xi1>
    %9 = vector.extract_strided_slice %0 {offsets = [0, 0, 2], sizes = [2, 16, 1], strides = [1, 1, 1]} : vector<2x16x4xi32> to vector<2x16x1xi32>
    %10 = vector.broadcast %9 : vector<2x16x1xi32> to vector<2x16x128xi32>
    %11 = arith.cmpi eq, %1, %10 : vector<2x16x128xi32>
    %12 = arith.ori %8, %11 : vector<2x16x128xi1>
    %13 = vector.extract_strided_slice %0 {offsets = [0, 0, 3], sizes = [2, 16, 1], strides = [1, 1, 1]} : vector<2x16x4xi32> to vector<2x16x1xi32>
    %14 = vector.broadcast %13 : vector<2x16x1xi32> to vector<2x16x128xi32>
    %15 = arith.cmpi eq, %1, %14 : vector<2x16x128xi32>
    %16 = arith.ori %12, %15 : vector<2x16x128xi1>
    %17 = arith.extui %16 : vector<2x16x128xi1> to vector<2x16x128xi32>
    %18 = arith.sitofp %17 : vector<2x16x128xi32> to vector<2x16x128xf32>
    %19 = arith.truncf %18 : vector<2x16x128xf32> to vector<2x16x128xbf16>
    %20 = vector.shape_cast %19 : vector<2x16x128xbf16> to vector<32x128xbf16>
    %c0_2 = arith.constant 0 : index
    %c0_3 = arith.constant 0 : index
    %21 = vector.load %arg2[%c0_2, %c0_3] : memref<128x128xbf16, #tpu.memory_space<vmem>>, vector<128x128xbf16>
    %cst = arith.constant dense<0.000000e+00> : vector<32x128xf32>
    %22 = tpu.matmul %20, %21, %cst {dimension_numbers = #tpu.dot_dimension_numbers<[1], [0], [0], [1], [0, 0, 1, 1], [], []>} : vector<32x128xbf16>, vector<128x128xbf16>, vector<32x128xf32> -> vector<32x128xf32>
    %23 = vector.shape_cast %22 : vector<32x128xf32> to vector<2x16x128xf32>
    %c0_4 = arith.constant 0 : index
    %c0_5 = arith.constant 0 : index
    %24 = vector.load %arg3[%c0_4, %c0_5] : memref<16x128xf32, #tpu.memory_space<vmem>>, vector<16x128xf32>
    %25 = vector.shape_cast %24 : vector<16x128xf32> to vector<1x16x128xf32>
    %26 = vector.broadcast %25 : vector<1x16x128xf32> to vector<2x16x128xf32>
    %27 = arith.addf %23, %26 : vector<2x16x128xf32>
    %cst_6 = arith.constant 0.000000e+00 : f32
    %28 = vector.broadcast %cst_6 : f32 to vector<2x16x128xf32>
    %29 = arith.maximumf %27, %28 : vector<2x16x128xf32>
    %cst_7 = arith.constant dense<0xFF800000> : vector<2x128xf32>
    %30 = vector.multi_reduction <maximumf>, %29, %cst_7 [1] : vector<2x16x128xf32> to vector<2x128xf32>
    %31 = arith.truncf %30 : vector<2x128xf32> to vector<2x128xbf16>
    %c0_8 = arith.constant 0 : index
    %c0_9 = arith.constant 0 : index
    %32 = vector.load %arg4[%c0_8, %c0_9] : memref<128x768xbf16, #tpu.memory_space<vmem>>, vector<128x768xbf16>
    %cst_10 = arith.constant dense<0.000000e+00> : vector<2x768xf32>
    %33 = tpu.matmul %31, %32, %cst_10 {dimension_numbers = #tpu.dot_dimension_numbers<[1], [0], [0], [1], [0, 0, 1, 1], [], []>} : vector<2x128xbf16>, vector<128x768xbf16>, vector<2x768xf32> -> vector<2x768xf32>
    %c0_11 = arith.constant 0 : index
    %c0_12 = arith.constant 0 : index
    %34 = vector.load %arg5[%c0_11, %c0_12] : memref<1x768xf32, #tpu.memory_space<vmem>>, vector<1x768xf32>
    %35 = vector.broadcast %34 : vector<1x768xf32> to vector<2x768xf32>
    %36 = arith.addf %33, %35 : vector<2x768xf32>
    %c0_13 = arith.constant 0 : index
    %c0_14 = arith.constant 0 : index
    %37 = vector.load %arg6[%c0_13, %c0_14] : memref<2x768xf32, #tpu.memory_space<vmem>>, vector<2x768xf32>
    tpu.vector_store %arg6[%c0_13, %c0_14], %36 {strides = array<i32>} : memref<2x768xf32, #tpu.memory_space<vmem>>, vector<2x768xf32>,
    return
  }
  func.func @transform_0(%arg0: i32) -> (i32, i32, i32) {
    %c0_i32 = arith.constant 0 : i32
    %c0_i32_0 = arith.constant 0 : i32
    %c0_i32_1 = arith.constant 0 : i32
    return %arg0, %c0_i32, %c0_i32_0 : i32, i32, i32
  }
  func.func @transform_1(%arg0: i32) -> (i32, i32) {
    %c0_i32 = arith.constant 0 : i32
    %c0_i32_0 = arith.constant 0 : i32
    %c0_i32_1 = arith.constant 0 : i32
    return %c0_i32, %c0_i32_0 : i32, i32
  }
  func.func @transform_2(%arg0: i32) -> (i32, i32) {
    %c0_i32 = arith.constant 0 : i32
    %c0_i32_0 = arith.constant 0 : i32
    %c0_i32_1 = arith.constant 0 : i32
    return %c0_i32, %c0_i32_0 : i32, i32
  }
  func.func @transform_3(%arg0: i32) -> (i32, i32) {
    %c0_i32 = arith.constant 0 : i32
    %c0_i32_0 = arith.constant 0 : i32
    %c0_i32_1 = arith.constant 0 : i32
    return %c0_i32, %c0_i32_0 : i32, i32
  }
  func.func @transform_4(%arg0: i32) -> (i32, i32) {
    %c0_i32 = arith.constant 0 : i32
    %c0_i32_0 = arith.constant 0 : i32
    %c0_i32_1 = arith.constant 0 : i32
    return %c0_i32, %c0_i32_0 : i32, i32
  }
  func.func @transform_5(%arg0: i32) -> (i32, i32) {
    %c0_i32 = arith.constant 0 : i32
    %c0_i32_0 = arith.constant 0 : i32
    return %arg0, %c0_i32 : i32, i32
  }
}

</mosaic_0001>

<llo_original>
// kernel: tpu_custom_call.1
$region0: #{tpu_custom_call.1}
  #allocation0 [shape = 'u32[]', space=smem, size = 0x4, offset = 0x4, fixed_abs, tag = 'smem constant byte address 0x4 - core index']
  #allocation1 [shape = 'u32[144,128]{1,0:T(1,128)}', space=vmem, size = 0x12000, scoped, tag = 'internal scratch']
  %s0 = inlined_call_operand.vmem [shape: s32[2,16,4], index: 0, kind: input, shape index: {}]
  %s1 = inlined_call_operand.hbm [shape: bf16[128,128], index: 1, kind: input, shape index: {}]
  %s2 = inlined_call_operand.vmem [shape: f32[16,128], index: 2, kind: input, shape index: {}]
  %s3 = inlined_call_operand.hbm [shape: bf16[128,768], index: 3, kind: input, shape index: {}]
  %s4 = inlined_call_operand.vmem [shape: f32[1,768], index: 4, kind: input, shape index: {}]
  %s5 = inlined_call_operand.hbm [shape: f32[2,768], index: 5, kind: output, shape index: {}]
  %s6 = sld [smem:[#allocation0]]
  $region38: #{tpu_custom_call.1} parent=0
    _
  %s8 = ssub.s32 1, %s6
  %s9 = scalar_select 0, %s8, %s6
  $region1: #{tpu_custom_call.1} parent=0
    #allocation2 [shape = 'u8[32768]{0}', space=vmem, size = 0x8000, scoped, tag = 'input window, operand 1, single buffered']
    #allocation3 [shape = 's32[1]{0}', space=sflag, size = 0x4, scoped, tag = 'scoped memory for tpu_custom_call.1']
    #allocation4 [shape = 's32[1]{0}', space=sflag, size = 0x4, scoped, tag = 'scoped memory for tpu_custom_call.1']
    #allocation5 [shape = 'u8[196608]{0}', space=vmem, size = 0x30000, scoped, tag = 'input window, operand 3, single buffered']
    #allocation6 [shape = 's32[1]{0}', space=sflag, size = 0x4, scoped, tag = 'scoped memory for tpu_custom_call.1']
    #allocation7 [shape = 'u8[6144]{0}', space=vmem, size = 0x1800, scoped, tag = 'output window, operand 0, single buffered']
    %10 = vsyncpa [#allocation3], 0
    %11 = vsyncpa [#allocation6], 0
    %12 = vsyncpa [#allocation4], 0
    // Predicated region
    $region2: #{tpu_custom_call.1} parent=1 // pred_check
      _
    $region3: #{tpu_custom_call.1} parent=1 // pred_check_branch
      %14 = sbr.rel (0) target = $region5
    $region4: #{tpu_custom_call.1} parent=1 // pred_region
      _
    $region5: #{tpu_custom_call.1} parent=1 // pred_fallthru
      _
    // Predicated region
    $region6: #{tpu_custom_call.1} parent=1 // pred_check
      _
    $region7: #{tpu_custom_call.1} parent=1 // pred_check_branch
      %16 = sbr.rel (0) target = $region9
    $region8: #{tpu_custom_call.1} parent=1 // pred_region
      %s18 = ssub.s32 1024, 1024
      %19 = vsyncadd [#allocation3], %s18
      %s20 = sshll.u32 [#allocation2], 4
      %s21 = int_to_ptr.vmem [resolvable:$true] %s20
      %26 = dma.hbm_to_vmem [thread:$0]  %s1, 1024, %s21, [#allocation3], 64, 64, 4
    $region9: #{tpu_custom_call.1} parent=1 // pred_fallthru
      _
    // Predicated region
    $region10: #{tpu_custom_call.1} parent=1 // pred_check
      _
    $region11: #{tpu_custom_call.1} parent=1 // pred_check_branch
      %28 = sbr.rel (0) target = $region13
    $region12: #{tpu_custom_call.1} parent=1 // pred_region
      _
    $region13: #{tpu_custom_call.1} parent=1 // pred_fallthru
      _
    // Predicated region
    $region14: #{tpu_custom_call.1} parent=1 // pred_check
      _
    $region15: #{tpu_custom_call.1} parent=1 // pred_check_branch
      %30 = sbr.rel (0) target = $region17
    $region16: #{tpu_custom_call.1} parent=1 // pred_region
      %s32 = ssub.s32 6144, 6144
      %33 = vsyncadd [#allocation6], %s32
      %s34 = sshll.u32 [#allocation5], 4
      %s35 = int_to_ptr.vmem [resolvable:$true] %s34
      %40 = dma.hbm_to_vmem [thread:$0]  %s3, 6144, %s35, [#allocation6], 384, 384, 24
    $region17: #{tpu_custom_call.1} parent=1 // pred_fallthru
      _
    // Predicated region
    $region18: #{tpu_custom_call.1} parent=1 // pred_check
      _
    $region19: #{tpu_custom_call.1} parent=1 // pred_check_branch
      %42 = sbr.rel (0) target = $region21
    $region20: #{tpu_custom_call.1} parent=1 // pred_region
      _
    $region21: #{tpu_custom_call.1} parent=1 // pred_fallthru
      _
    // Predicated region
    $region22: #{tpu_custom_call.1} parent=1 // pred_check
      _
    $region23: #{tpu_custom_call.1} parent=1 // pred_check_branch
      %44 = sbr.rel (0) target = $region25
    $region24: #{tpu_custom_call.1} parent=1 // pred_region
      %45 = dma.done [#allocation3], 1024
    $region25: #{tpu_custom_call.1} parent=1 // pred_fallthru
      _
    // Predicated region
    $region26: #{tpu_custom_call.1} parent=1 // pred_check
      _
    $region27: #{tpu_custom_call.1} parent=1 // pred_check_branch
      %47 = sbr.rel (0) target = $region29
    $region28: #{tpu_custom_call.1} parent=1 // pred_region
      %48 = dma.done [#allocation6], 6144
    $region29: #{tpu_custom_call.1} parent=1 // pred_fallthru
      _
    %v50 = vld [vmem:[%s0] sm:$0xff]
    %v51 = vld [vmem:[%s0 + $0x8] sm:$0xff]
    %v52 = vld [vmem:[%s0 + $0x10] sm:$0xff]
    %v53 = vld [vmem:[%s0 + $0x18] sm:$0xff]
    %v54 = vlaneseq
    %v55 = vand.u32 %v54, 127
    %56 = vset.pattern.permute.xlu0 0
    %57 = vperm.xlu0 %56, %v50
    %v58 = vpop.permute.xlu0 %57
    %59 = vset.pattern.permute.xlu0 0
    %60 = vperm.xlu0 %59, %v51
    %v61 = vpop.permute.xlu0 %60
    %62 = vset.pattern.permute.xlu0 0
    %63 = vperm.xlu0 %62, %v52
    %v64 = vpop.permute.xlu0 %63
    %65 = vset.pattern.permute.xlu0 0
    %66 = vperm.xlu0 %65, %v53
    %v67 = vpop.permute.xlu0 %66
    %vm68 = vcmp.eq.s32.totalorder %v55, %v58
    %vm69 = vcmp.eq.s32.totalorder %v55, %v61
    %vm70 = vcmp.eq.s32.totalorder %v55, %v64
    %vm71 = vcmp.eq.s32.totalorder %v55, %v67
    %72 = vset.pattern.permute.xlu0 1
    %73 = vperm.xlu0 %72, %v50
    %v74 = vpop.permute.xlu0 %73
    %75 = vset.pattern.permute.xlu0 1
    %76 = vperm.xlu0 %75, %v51
    %v77 = vpop.permute.xlu0 %76
    %78 = vset.pattern.permute.xlu0 1
    %79 = vperm.xlu0 %78, %v52
    %v80 = vpop.permute.xlu0 %79
    %81 = vset.pattern.permute.xlu0 1
    %82 = vperm.xlu0 %81, %v53
    %v83 = vpop.permute.xlu0 %82
    %vm84 = vcmp.eq.s32.totalorder %v55, %v74
    %vm85 = vcmp.eq.s32.totalorder %v55, %v77
    %vm86 = vcmp.eq.s32.totalorder %v55, %v80
    %vm87 = vcmp.eq.s32.totalorder %v55, %v83
    %vm88 = vmor %vm68, %vm84
    %vm89 = vmor %vm69, %vm85
    %vm90 = vmor %vm70, %vm86
    %vm91 = vmor %vm71, %vm87
    %92 = vset.pattern.permute.xlu0 2
    %93 = vperm.xlu0 %92, %v50
    %v94 = vpop.permute.xlu0 %93
    %95 = vset.pattern.permute.xlu0 2
    %96 = vperm.xlu0 %95, %v51
    %v97 = vpop.permute.xlu0 %96
    %98 = vset.pattern.permute.xlu0 2
    %99 = vperm.xlu0 %98, %v52
    %v100 = vpop.permute.xlu0 %99
    %101 = vset.pattern.permute.xlu0 2
    %102 = vperm.xlu0 %101, %v53
    %v103 = vpop.permute.xlu0 %102
    %vm104 = vcmp.eq.s32.totalorder %v55, %v94
    %vm105 = vcmp.eq.s32.totalorder %v55, %v97
    %vm106 = vcmp.eq.s32.totalorder %v55, %v100
    %vm107 = vcmp.eq.s32.totalorder %v55, %v103
    %vm108 = vmor %vm88, %vm104
    %vm109 = vmor %vm89, %vm105
    %vm110 = vmor %vm90, %vm106
    %vm111 = vmor %vm91, %vm107
    %112 = vset.pattern.permute.xlu0 3
    %113 = vperm.xlu0 %112, %v50
    %v114 = vpop.permute.xlu0 %113
    %115 = vset.pattern.permute.xlu0 3
    %116 = vperm.xlu0 %115, %v51
    %v117 = vpop.permute.xlu0 %116
    %118 = vset.pattern.permute.xlu0 3
    %119 = vperm.xlu0 %118, %v52
    %v120 = vpop.permute.xlu0 %119
    %121 = vset.pattern.permute.xlu0 3
    %122 = vperm.xlu0 %121, %v53
    %v123 = vpop.permute.xlu0 %122
    %vm124 = vcmp.eq.s32.totalorder %v55, %v114
    %vm125 = vcmp.eq.s32.totalorder %v55, %v117
    %vm126 = vcmp.eq.s32.totalorder %v55, %v120
    %vm127 = vcmp.eq.s32.totalorder %v55, %v123
    %vm128 = vmor %vm108, %vm124
    %vm129 = vmor %vm109, %vm125
    %vm130 = vmor %vm110, %vm126
    %vm131 = vmor %vm111, %vm127
    %v132 = vsel %vm128, 1, 0
    %v133 = vsel %vm129, 1, 0
    %v134 = vsel %vm130, 1, 0
    %v135 = vsel %vm131, 1, 0
    %v136 = vcvt.s32.f32 %v132
    %v137 = vcvt.s32.f32 %v133
    %v138 = vcvt.s32.f32 %v134
    %v139 = vcvt.s32.f32 %v135
    %v140 = vpack.c.bf16 %v137, %v136
    %v141 = vpack.c.bf16 %v139, %v138
    %v142 = vld [vmem:[#allocation2] sm:$0xf]
    %v143 = vld [vmem:[#allocation2 + $0x4] sm:$0xf]
    %v144 = vld [vmem:[#allocation2 + $0x8] sm:$0xf]
    %v145 = vld [vmem:[#allocation2 + $0xc] sm:$0xf]
    %v146 = vld [vmem:[#allocation2 + $0x10] sm:$0xf]
    %v147 = vld [vmem:[#allocation2 + $0x14] sm:$0xf]
    %v148 = vld [vmem:[#allocation2 + $0x18] sm:$0xf]
    %v149 = vld [vmem:[#allocation2 + $0x1c] sm:$0xf]
    %v150 = vld [vmem:[#allocation2 + $0x20] sm:$0xf]
    %v151 = vld [vmem:[#allocation2 + $0x24] sm:$0xf]
    %v152 = vld [vmem:[#allocation2 + $0x28] sm:$0xf]
    %v153 = vld [vmem:[#allocation2 + $0x2c] sm:$0xf]
    %v154 = vld [vmem:[#allocation2 + $0x30] sm:$0xf]
    %v155 = vld [vmem:[#allocation2 + $0x34] sm:$0xf]
    %v156 = vld [vmem:[#allocation2 + $0x38] sm:$0xf]
    %v157 = vld [vmem:[#allocation2 + $0x3c] sm:$0xf]
    %v174 = vunpack.c.l.b16 %v142
    %v175 = vunpack.c.l.b16 %v143
    %v176 = vunpack.c.l.b16 %v144
    %v177 = vunpack.c.l.b16 %v145
    %v178 = vunpack.c.l.b16 %v146
    %v179 = vunpack.c.l.b16 %v147
    %v180 = vunpack.c.l.b16 %v148
    %v181 = vunpack.c.l.b16 %v149
    %v182 = vunpack.c.l.b16 %v150
    %v183 = vunpack.c.l.b16 %v151
    %v184 = vunpack.c.l.b16 %v152
    %v185 = vunpack.c.l.b16 %v153
    %v186 = vunpack.c.l.b16 %v154
    %v187 = vunpack.c.l.b16 %v155
    %v188 = vunpack.c.l.b16 %v156
    %v189 = vunpack.c.l.b16 %v157
    %v190 = vpack.c.b16 %v175, %v174
    %v191 = vpack.c.b16 %v177, %v176
    %v192 = vpack.c.b16 %v179, %v178
    %v193 = vpack.c.b16 %v181, %v180
    %v194 = vpack.c.b16 %v183, %v182
    %v195 = vpack.c.b16 %v185, %v184
    %v196 = vpack.c.b16 %v187, %v186
    %v197 = vpack.c.b16 %v189, %v188
    %206 = vmatprep.subr.bf16.mxu0 0
    %207 = vmatpush1.bf16.msra.mxu0 %v197
    %208 = vmatprep.subr.bf16.mxu0 0
    %209 = vmatpush1.bf16.msra.mxu0 %v196
    %210 = vmatprep.subr.bf16.mxu0 0
    %211 = vmatpush1.bf16.msra.mxu0 %v195
    %212 = vmatprep.subr.bf16.mxu0 0
    %213 = vmatpush1.bf16.msra.mxu0 %v194
    %214 = vmatprep.subr.bf16.mxu0 0
    %215 = vmatpush1.bf16.msra.mxu0 %v193
    %216 = vmatprep.subr.bf16.mxu0 0
    %217 = vmatpush1.bf16.msra.mxu0 %v192
    %218 = vmatprep.subr.bf16.mxu0 0
    %219 = vmatpush1.bf16.msra.mxu0 %v191
    %220 = vmatprep.subr.bf16.mxu0 0
    %221 = vmatpush1.bf16.msra.mxu0 %v190
    %222 = vmatprep.subr.bf16.mxu0 0
    %223 = vmatpush2.bf16.msra.mxu0 0
    %224 = vmatprep.subr.bf16.mxu0 0
    %225 = vmatpush2.bf16.msra.mxu0 0
    %226 = vmatprep.subr.bf16.mxu0 0
    %227 = vmatpush2.bf16.msra.mxu0 0
    %228 = vmatprep.subr.bf16.mxu0 0
    %229 = vmatpush2.bf16.msra.mxu0 0
    %230 = vmatprep.subr.bf16.mxu0 0
    %231 = vmatpush2.bf16.msra.mxu0 0
    %232 = vmatprep.subr.bf16.mxu0 0
    %233 = vmatpush2.bf16.msra.mxu0 0
    %234 = vmatprep.subr.bf16.mxu0 0
    %235 = vmatpush2.bf16.msra.mxu0 0
    %236 = vmatprep.subr.bf16.mxu0 0
    %237 = vmatpush2.bf16.msra.mxu0 0
    %238 = vmatprep.mubr.bf16.mxu0 0
    %239 = vmatmul.mubr.bf16.gmra.mxu0 %v140
    %v240 = vpop.f32.mrf.mxu0
    %v241 = vadd.f32 0.0, %v240
    %v242 = vpop.f32.mrf.mxu0
    %v243 = vpop.f32.mrf.mxu0
    %v244 = vadd.f32 0.0, %v243
    %v245 = vpop.f32.mrf.mxu0
    %246 = vmatprep.mubr.bf16.mxu0 0
    %247 = vmatmul.mubr.bf16.gmra.mxu0 %v141
    %v248 = vpop.f32.mrf.mxu0
    %v249 = vadd.f32 0.0, %v248
    %v250 = vpop.f32.mrf.mxu0
    %v251 = vpop.f32.mrf.mxu0
    %v252 = vadd.f32 0.0, %v251
    %v253 = vpop.f32.mrf.mxu0
    %254 = vdwg.mxu0
    %v255 = vld [vmem:[%s2] sm:$0xff]
    %v256 = vld [vmem:[%s2 + $0x8] sm:$0xff]
    %v257 = vadd.f32 %v241, %v255
    %v258 = vadd.f32 %v244, %v256
    %v259 = vadd.f32 %v249, %v255
    %v260 = vadd.f32 %v252, %v256
    %v261 = vmax.f32 %v257, 0.0
    %v262 = vmax.f32 %v258, 0.0
    %v263 = vmax.f32 %v259, 0.0
    %v264 = vmax.f32 %v260, 0.0
    %v265 = vmax.f32 %v261, %v262
    %v266 = vrot.slane %v265, 4
    %v267 = vmax.f32 %v265, %v266
    %v268 = vrot.slane %v267, 2
    %v269 = vmax.f32 %v267, %v268
    %v270 = vrot.slane %v269, 1
    %v271 = vmax.f32 %v269, %v270
    %v272 = vmax.f32 %v263, %v264
    %v273 = vrot.slane %v272, 4
    %v274 = vmax.f32 %v272, %v273
    %v275 = vrot.slane %v274, 2
    %v276 = vmax.f32 %v274, %v275
    %v277 = vrot.slane %v276, 1
    %v278 = vmax.f32 %v276, %v277
    %v279 = vpack.c.bf16 %v271, %v271
    %v280 = vpack.c.bf16 %v278, %v278
    %v281 = vld [vmem:[#allocation5] sm:$0xff]
    %v282 = vld [vmem:[#allocation5 + $0x8] sm:$0xff]
    %v283 = vld [vmem:[#allocation5 + $0x10] sm:$0xff]
    %v284 = vld [vmem:[#allocation5 + $0x18] sm:$0xff]
    %v285 = vld [vmem:[#allocation5 + $0x20] sm:$0xff]
    %v286 = vld [vmem:[#allocation5 + $0x28] sm:$0xff]
    %v287 = vld [vmem:[#allocation5 + $0x30] sm:$0xff]
    %v288 = vld [vmem:[#allocation5 + $0x38] sm:$0xff]
    %v289 = vld [vmem:[#allocation5 + $0x40] sm:$0xff]
    %v290 = vld [vmem:[#allocation5 + $0x48] sm:$0xff]
    %v291 = vld [vmem:[#allocation5 + $0x50] sm:$0xff]
    %v292 = vld [vmem:[#allocation5 + $0x58] sm:$0xff]
    %v293 = vld [vmem:[#allocation5 + $0x60] sm:$0xff]
    %v294 = vld [vmem:[#allocation5 + $0x68] sm:$0xff]
    %v295 = vld [vmem:[#allocation5 + $0x70] sm:$0xff]
    %v296 = vld [vmem:[#allocation5 + $0x78] sm:$0xff]
    %v297 = vld [vmem:[#allocation5 + $0x80] sm:$0xff]
    %v298 = vld [vmem:[#allocation5 + $0x88] sm:$0xff]
    %v299 = vld [vmem:[#allocation5 + $0x90] sm:$0xff]
    %v300 = vld [vmem:[#allocation5 + $0x98] sm:$0xff]
    %v301 = vld [vmem:[#allocation5 + $0xa0] sm:$0xff]
    %v302 = vld [vmem:[#allocation5 + $0xa8] sm:$0xff]
    %v303 = vld [vmem:[#allocation5 + $0xb0] sm:$0xff]
    %v304 = vld [vmem:[#allocation5 + $0xb8] sm:$0xff]
    %v305 = vld [vmem:[#allocation5 + $0xc0] sm:$0xff]
    %v306 = vld [vmem:[#allocation5 + $0xc8] sm:$0xff]
    %v307 = vld [vmem:[#allocation5 + $0xd0] sm:$0xff]
    %v308 = vld [vmem:[#allocation5 + $0xd8] sm:$0xff]
    %v309 = vld [vmem:[#allocation5 + $0xe0] sm:$0xff]
    %v310 = vld [vmem:[#allocation5 + $0xe8] sm:$0xff]
    %v311 = vld [vmem:[#allocation5 + $0xf0] sm:$0xff]
    %v312 = vld [vmem:[#allocation5 + $0xf8] sm:$0xff]
    %v313 = vld [vmem:[#allocation5 + $0x100] sm:$0xff]
    %v314 = vld [vmem:[#allocation5 + $0x108] sm:$0xff]
    %v315 = vld [vmem:[#allocation5 + $0x110] sm:$0xff]
    %v316 = vld [vmem:[#allocation5 + $0x118] sm:$0xff]
    %v317 = vld [vmem:[#allocation5 + $0x120] sm:$0xff]
    %v318 = vld [vmem:[#allocation5 + $0x128] sm:$0xff]
    %v319 = vld [vmem:[#allocation5 + $0x130] sm:$0xff]
    %v320 = vld [vmem:[#allocation5 + $0x138] sm:$0xff]
    %v321 = vld [vmem:[#allocation5 + $0x140] sm:$0xff]
    %v322 = vld [vmem:[#allocation5 + $0x148] sm:$0xff]
    %v323 = vld [vmem:[#allocation5 + $0x150] sm:$0xff]
    %v324 = vld [vmem:[#allocation5 + $0x158] sm:$0xff]
    %v325 = vld [vmem:[#allocation5 + $0x160] sm:$0xff]
    %v326 = vld [vmem:[#allocation5 + $0x168] sm:$0xff]
    %v327 = vld [vmem:[#allocation5 + $0x170] sm:$0xff]
    %v328 = vld [vmem:[#allocation5 + $0x178] sm:$0xff]
    %v329 = vld [vmem:[%s4] sm:$0x3f]
    %v331 = vlaneseq
    %v332 = vshrl.u32 %v331, 7
    %v333 = vsub.s32 0, %v332
    %v334 = vrot.slane %v329, %v333
    %v335 = vlaneseq
    %v336 = vshrl.u32 %v335, 7
    %v337 = vsub.s32 1, %v336
    %v338 = vrot.slane %v329, %v337
    %v339 = vlaneseq
    %v340 = vshrl.u32 %v339, 7
    %v341 = vsub.s32 2, %v340
    %v342 = vrot.slane %v329, %v341
    %v343 = vlaneseq
    %v344 = vshrl.u32 %v343, 7
    %v345 = vsub.s32 3, %v344
    %v346 = vrot.slane %v329, %v345
    %v347 = vlaneseq
    %v348 = vshrl.u32 %v347, 7
    %v349 = vsub.s32 4, %v348
    %v350 = vrot.slane %v329, %v349
    %v351 = vlaneseq
    %v352 = vshrl.u32 %v351, 7
    %v353 = vsub.s32 5, %v352
    %v354 = vrot.slane %v329, %v353
    %v363 = vunpack.c.l.b16 %v279
    %v364 = vunpack.c.l.b16 %v280
    %vm365 = vcmask 1041409
    %v366 = vsel %vm365, %v364, %v363
    %v367 = vpack.c.b16 %v366, %v366
    %v417 = vunpack.c.l.b16 %v281
    %v418 = vunpack.c.h.b16 %v281
    %v419 = vunpack.c.l.b16 %v282
    %v420 = vunpack.c.h.b16 %v282
    %v421 = vunpack.c.l.b16 %v283
    %v422 = vunpack.c.h.b16 %v283
    %v423 = vunpack.c.l.b16 %v284
    %v424 = vunpack.c.h.b16 %v284
    %v425 = vunpack.c.l.b16 %v285
    %v426 = vunpack.c.h.b16 %v285
    %v427 = vunpack.c.l.b16 %v286
    %v428 = vunpack.c.h.b16 %v286
    %v429 = vunpack.c.l.b16 %v287
    %v430 = vunpack.c.h.b16 %v287
    %v431 = vunpack.c.l.b16 %v288
    %v432 = vunpack.c.h.b16 %v288
    %v433 = vunpack.c.l.b16 %v289
    %v434 = vunpack.c.h.b16 %v289
    %v435 = vunpack.c.l.b16 %v290
    %v436 = vunpack.c.h.b16 %v290
    %v437 = vunpack.c.l.b16 %v291
    %v438 = vunpack.c.h.b16 %v291
    %v439 = vunpack.c.l.b16 %v292
    %v440 = vunpack.c.h.b16 %v292
    %v441 = vunpack.c.l.b16 %v293
    %v442 = vunpack.c.h.b16 %v293
    %v443 = vunpack.c.l.b16 %v294
    %v444 = vunpack.c.h.b16 %v294
    %v445 = vunpack.c.l.b16 %v295
    %v446 = vunpack.c.h.b16 %v295
    %v447 = vunpack.c.l.b16 %v296
    %v448 = vunpack.c.h.b16 %v296
    %v449 = vunpack.c.l.b16 %v297
    %v450 = vunpack.c.h.b16 %v297
    %v451 = vunpack.c.l.b16 %v298
    %v452 = vunpack.c.h.b16 %v298
    %v453 = vunpack.c.l.b16 %v299
    %v454 = vunpack.c.h.b16 %v299
    %v455 = vunpack.c.l.b16 %v300
    %v456 = vunpack.c.h.b16 %v300
    %v457 = vunpack.c.l.b16 %v301
    %v458 = vunpack.c.h.b16 %v301
    %v459 = vunpack.c.l.b16 %v302
    %v460 = vunpack.c.h.b16 %v302
    %v461 = vunpack.c.l.b16 %v303
    %v462 = vunpack.c.h.b16 %v303
    %v463 = vunpack.c.l.b16 %v304
    %v464 = vunpack.c.h.b16 %v304
    %v465 = vunpack.c.l.b16 %v305
    %v466 = vunpack.c.h.b16 %v305
    %v467 = vunpack.c.l.b16 %v306
    %v468 = vunpack.c.h.b16 %v306
    %v469 = vunpack.c.l.b16 %v307
    %v470 = vunpack.c.h.b16 %v307
    %v471 = vunpack.c.l.b16 %v308
    %v472 = vunpack.c.h.b16 %v308
    %v473 = vunpack.c.l.b16 %v309
    %v474 = vunpack.c.h.b16 %v309
    %v475 = vunpack.c.l.b16 %v310
    %v476 = vunpack.c.h.b16 %v310
    %v477 = vunpack.c.l.b16 %v311
    %v478 = vunpack.c.h.b16 %v311
    %v479 = vunpack.c.l.b16 %v312
    %v480 = vunpack.c.h.b16 %v312
    %v481 = vunpack.c.l.b16 %v313
    %v482 = vunpack.c.h.b16 %v313
    %v483 = vunpack.c.l.b16 %v314
    %v484 = vunpack.c.h.b16 %v314
    %v485 = vunpack.c.l.b16 %v315
    %v486 = vunpack.c.h.b16 %v315
    %v487 = vunpack.c.l.b16 %v316
    %v488 = vunpack.c.h.b16 %v316
    %v489 = vunpack.c.l.b16 %v317
    %v490 = vunpack.c.h.b16 %v317
    %v491 = vunpack.c.l.b16 %v318
    %v492 = vunpack.c.h.b16 %v318
    %v493 = vunpack.c.l.b16 %v319
    %v494 = vunpack.c.h.b16 %v319
    %v495 = vunpack.c.l.b16 %v320
    %v496 = vunpack.c.h.b16 %v320
    %v497 = vunpack.c.l.b16 %v321
    %v498 = vunpack.c.h.b16 %v321
    %v499 = vunpack.c.l.b16 %v322
    %v500 = vunpack.c.h.b16 %v322
    %v501 = vunpack.c.l.b16 %v323
    %v502 = vunpack.c.h.b16 %v323
    %v503 = vunpack.c.l.b16 %v324
    %v504 = vunpack.c.h.b16 %v324
    %v505 = vunpack.c.l.b16 %v325
    %v506 = vunpack.c.h.b16 %v325
    %v507 = vunpack.c.l.b16 %v326
    %v508 = vunpack.c.h.b16 %v326
    %v509 = vunpack.c.l.b16 %v327
    %v510 = vunpack.c.h.b16 %v327
    %v511 = vunpack.c.l.b16 %v328
    %v512 = vunpack.c.h.b16 %v328
    %v513 = vpack.c.b16 %v423, %v417
    %v514 = vpack.c.b16 %v424, %v418
    %v515 = vpack.c.b16 %v425, %v419
    %v516 = vpack.c.b16 %v426, %v420
    %v517 = vpack.c.b16 %v427, %v421
    %v518 = vpack.c.b16 %v428, %v422
    %v519 = vpack.c.b16 %v435, %v429
    %v520 = vpack.c.b16 %v436, %v430
    %v521 = vpack.c.b16 %v437, %v431
    %v522 = vpack.c.b16 %v438, %v432
    %v523 = vpack.c.b16 %v439, %v433
    %v524 = vpack.c.b16 %v440, %v434
    %v525 = vpack.c.b16 %v447, %v441
    %v526 = vpack.c.b16 %v448, %v442
    %v527 = vpack.c.b16 %v449, %v443
    %v528 = vpack.c.b16 %v450, %v444
    %v529 = vpack.c.b16 %v451, %v445
    %v530 = vpack.c.b16 %v452, %v446
    %v531 = vpack.c.b16 %v459, %v453
    %v532 = vpack.c.b16 %v460, %v454
    %v533 = vpack.c.b16 %v461, %v455
    %v534 = vpack.c.b16 %v462, %v456
    %v535 = vpack.c.b16 %v463, %v457
    %v536 = vpack.c.b16 %v464, %v458
    %v537 = vpack.c.b16 %v471, %v465
    %v538 = vpack.c.b16 %v472, %v466
    %v539 = vpack.c.b16 %v473, %v467
    %v540 = vpack.c.b16 %v474, %v468
    %v541 = vpack.c.b16 %v475, %v469
    %v542 = vpack.c.b16 %v476, %v470
    %v543 = vpack.c.b16 %v483, %v477
    %v544 = vpack.c.b16 %v484, %v478
    %v545 = vpack.c.b16 %v485, %v479
    %v546 = vpack.c.b16 %v486, %v480
    %v547 = vpack.c.b16 %v487, %v481
    %v548 = vpack.c.b16 %v488, %v482
    %v549 = vpack.c.b16 %v495, %v489
    %v550 = vpack.c.b16 %v496, %v490
    %v551 = vpack.c.b16 %v497, %v491
    %v552 = vpack.c.b16 %v498, %v492
    %v553 = vpack.c.b16 %v499, %v493
    %v554 = vpack.c.b16 %v500, %v494
    %v555 = vpack.c.b16 %v507, %v501
    %v556 = vpack.c.b16 %v508, %v502
    %v557 = vpack.c.b16 %v509, %v503
    %v558 = vpack.c.b16 %v510, %v504
    %v559 = vpack.c.b16 %v511, %v505
    %v560 = vpack.c.b16 %v512, %v506
    %609 = vmatprep.subr.bf16.mxu0 %v556
    %610 = vmatpush1.bf16.msra.mxu0 %v555
    %611 = vmatprep.subr.bf16.mxu0 %v550
    %612 = vmatpush1.bf16.msra.mxu0 %v549
    %613 = vmatprep.subr.bf16.mxu0 %v544
    %614 = vmatpush1.bf16.msra.mxu0 %v543
    %615 = vmatprep.subr.bf16.mxu0 %v538
    %616 = vmatpush1.bf16.msra.mxu0 %v537
    %617 = vmatprep.subr.bf16.mxu0 %v532
    %618 = vmatpush1.bf16.msra.mxu0 %v531
    %619 = vmatprep.subr.bf16.mxu0 %v526
    %620 = vmatpush1.bf16.msra.mxu0 %v525
    %621 = vmatprep.subr.bf16.mxu0 %v520
    %622 = vmatpush1.bf16.msra.mxu0 %v519
    %623 = vmatprep.subr.bf16.mxu0 %v514
    %624 = vmatpush1.bf16.msra.mxu0 %v513
    %625 = vmatprep.subr.bf16.mxu0 0
    %626 = vmatpush2.bf16.msra.mxu0 0
    %627 = vmatprep.subr.bf16.mxu0 0
    %628 = vmatpush2.bf16.msra.mxu0 0
    %629 = vmatprep.subr.bf16.mxu0 0
    %630 = vmatpush2.bf16.msra.mxu0 0
    %631 = vmatprep.subr.bf16.mxu0 0
    %632 = vmatpush2.bf16.msra.mxu0 0
    %633 = vmatprep.subr.bf16.mxu0 0
    %634 = vmatpush2.bf16.msra.mxu0 0
    %635 = vmatprep.subr.bf16.mxu0 0
    %636 = vmatpush2.bf16.msra.mxu0 0
    %637 = vmatprep.subr.bf16.mxu0 0
    %638 = vmatpush2.bf16.msra.mxu0 0
    %639 = vmatprep.subr.bf16.mxu0 0
    %640 = vmatpush2.bf16.msra.mxu0 0
    %641 = vmatprep.mubr.bf16.mxu0 0
    %642 = vmatmul.mubr.bf16.gmra.mxu0 %v367
    %v643 = vpop.f32.mrf.mxu0
    %v644 = vadd.f32 %v334, %v643
    %v645 = vpop.f32.mrf.mxu0
    %v646 = vadd.f32 %v338, %v645
    %v647 = vpop.f32.mrf.mxu0
    %v648 = vpop.f32.mrf.mxu0
    %649 = vdwg.mxu0
    %650 = vmatprep.subr.bf16.mxu0 %v558
    %651 = vmatpush1.bf16.msra.mxu0 %v557
    %652 = vmatprep.subr.bf16.mxu0 %v552
    %653 = vmatpush1.bf16.msra.mxu0 %v551
    %654 = vmatprep.subr.bf16.mxu0 %v546
    %655 = vmatpush1.bf16.msra.mxu0 %v545
    %656 = vmatprep.subr.bf16.mxu0 %v540
    %657 = vmatpush1.bf16.msra.mxu0 %v539
    %658 = vmatprep.subr.bf16.mxu0 %v534
    %659 = vmatpush1.bf16.msra.mxu0 %v533
    %660 = vmatprep.subr.bf16.mxu0 %v528
    %661 = vmatpush1.bf16.msra.mxu0 %v527
    %662 = vmatprep.subr.bf16.mxu0 %v522
    %663 = vmatpush1.bf16.msra.mxu0 %v521
    %664 = vmatprep.subr.bf16.mxu0 %v516
    %665 = vmatpush1.bf16.msra.mxu0 %v515
    %666 = vmatprep.subr.bf16.mxu0 0
    %667 = vmatpush2.bf16.msra.mxu0 0
    %668 = vmatprep.subr.bf16.mxu0 0
    %669 = vmatpush2.bf16.msra.mxu0 0
    %670 = vmatprep.subr.bf16.mxu0 0
    %671 = vmatpush2.bf16.msra.mxu0 0
    %672 = vmatprep.subr.bf16.mxu0 0
    %673 = vmatpush2.bf16.msra.mxu0 0
    %674 = vmatprep.subr.bf16.mxu0 0
    %675 = vmatpush2.bf16.msra.mxu0 0
    %676 = vmatprep.subr.bf16.mxu0 0
    %677 = vmatpush2.bf16.msra.mxu0 0
    %678 = vmatprep.subr.bf16.mxu0 0
    %679 = vmatpush2.bf16.msra.mxu0 0
    %680 = vmatprep.subr.bf16.mxu0 0
    %681 = vmatpush2.bf16.msra.mxu0 0
    %682 = vmatprep.mubr.bf16.mxu0 0
    %683 = vmatmul.mubr.bf16.gmra.mxu0 %v367
    %v684 = vpop.f32.mrf.mxu0
    %v685 = vadd.f32 %v342, %v684
    %v686 = vpop.f32.mrf.mxu0
    %v687 = vadd.f32 %v346, %v686
    %v688 = vpop.f32.mrf.mxu0
    %v689 = vpop.f32.mrf.mxu0
    %690 = vdwg.mxu0
    %691 = vmatprep.subr.bf16.mxu0 %v560
    %692 = vmatpush1.bf16.msra.mxu0 %v559
    %693 = vmatprep.subr.bf16.mxu0 %v554
    %694 = vmatpush1.bf16.msra.mxu0 %v553
    %695 = vmatprep.subr.bf16.mxu0 %v548
    %696 = vmatpush1.bf16.msra.mxu0 %v547
    %697 = vmatprep.subr.bf16.mxu0 %v542
    %698 = vmatpush1.bf16.msra.mxu0 %v541
    %699 = vmatprep.subr.bf16.mxu0 %v536
    %700 = vmatpush1.bf16.msra.mxu0 %v535
    %701 = vmatprep.subr.bf16.mxu0 %v530
    %702 = vmatpush1.bf16.msra.mxu0 %v529
    %703 = vmatprep.subr.bf16.mxu0 %v524
    %704 = vmatpush1.bf16.msra.mxu0 %v523
    %705 = vmatprep.subr.bf16.mxu0 %v518
    %706 = vmatpush1.bf16.msra.mxu0 %v517
    %707 = vmatprep.subr.bf16.mxu0 0
    %708 = vmatpush2.bf16.msra.mxu0 0
    %709 = vmatprep.subr.bf16.mxu0 0
    %710 = vmatpush2.bf16.msra.mxu0 0
    %711 = vmatprep.subr.bf16.mxu0 0
    %712 = vmatpush2.bf16.msra.mxu0 0
    %713 = vmatprep.subr.bf16.mxu0 0
    %714 = vmatpush2.bf16.msra.mxu0 0
    %715 = vmatprep.subr.bf16.mxu0 0
    %716 = vmatpush2.bf16.msra.mxu0 0
    %717 = vmatprep.subr.bf16.mxu0 0
    %718 = vmatpush2.bf16.msra.mxu0 0
    %719 = vmatprep.subr.bf16.mxu0 0
    %720 = vmatpush2.bf16.msra.mxu0 0
    %721 = vmatprep.subr.bf16.mxu0 0
    %722 = vmatpush2.bf16.msra.mxu0 0
    %723 = vmatprep.mubr.bf16.mxu0 0
    %724 = vmatmul.mubr.bf16.gmra.mxu0 %v367
    %v725 = vpop.f32.mrf.mxu0
    %v726 = vadd.f32 %v350, %v725
    %v727 = vpop.f32.mrf.mxu0
    %v728 = vadd.f32 %v354, %v727
    %v729 = vpop.f32.mrf.mxu0
    %v730 = vpop.f32.mrf.mxu0
    %731 = vdwg.mxu0
    %v738 = vcombine.low %v644, %v646
    %v739 = vcombine.low %v685, %v687
    %v741 = vunpack.c.l.s4 1983009808
    %v742 = vunpack.c.0.s8 %v741
    %v743 = vlaneseq
    %v744 = vshrl.u32 %v743, 7
    %v745 = vsub.s32 %v742, %v744
    %v746 = vrot.slane %v738, %v745
    %v748 = vunpack.c.l.s4 1983009808
    %v749 = vunpack.c.0.s8 %v748
    %v750 = vlaneseq
    %v751 = vshrl.u32 %v750, 7
    %v752 = vsub.s32 %v749, %v751
    %v753 = vrot.slane %v739, %v752
    %v754 = vcombine.low %v746, %v753
    %v755 = vcombine.low %v726, %v728
    %v757 = vunpack.c.l.s4 1983009808
    %v758 = vunpack.c.0.s8 %v757
    %v759 = vlaneseq
    %v760 = vshrl.u32 %v759, 7
    %v761 = vsub.s32 %v758, %v760
    %v762 = vrot.slane %v755, %v761
    %765 = vst [vmem:[#allocation7] sm:$0xff] %v754
    %766 = vst [vmem:[#allocation7 + $0x8] sm:$0xf] %v762
    // Predicated region
    $region30: #{tpu_custom_call.1} parent=1 // pred_check
      _
    $region31: #{tpu_custom_call.1} parent=1 // pred_check_branch
      %768 = sbr.rel (0) target = $region33
    $region32: #{tpu_custom_call.1} parent=1 // pred_region
      %s770 = ssub.s32 192, 192
      %771 = vsyncadd [#allocation4], %s770
      %s773 = sshll.u32 [#allocation7], 4
      %s774 = int_to_ptr.vmem [resolvable:$true] %s773
      %776 = dma.vmem_to_hbm [thread:$0]  %s774, 192, %s5, [#allocation4]
    $region33: #{tpu_custom_call.1} parent=1 // pred_fallthru
      _
    // Predicated region
    $region34: #{tpu_custom_call.1} parent=1 // pred_check
      _
    $region35: #{tpu_custom_call.1} parent=1 // pred_check_branch
      %778 = sbr.rel (0) target = $region37
    $region36: #{tpu_custom_call.1} parent=1 // pred_region
      %779 = dma.done [#allocation4], 192
    $region37: #{tpu_custom_call.1} parent=1 // pred_fallthru
      _
    %780 = vsyncpa [#allocation3], 1
    %781 = vsyncpa [#allocation6], 1
    %782 = vsyncpa [#allocation4], 1

</llo_original>
